<compile_context>
chip_gen: v7x
topology: tpu7x:2x2x1
jax: 0.10.0
libtpu: 0.0.40
codegen_flags: <defaults>
</compile_context>

<pallas_src>
import jax
import jax.numpy as jnp
from jax import lax
from jax.experimental import pallas as pl
from jax.experimental.pallas import tpu as pltpu


# ----------------------------- math helpers -----------------------------------

def _sigmoid(z):
    # EUP tanh formulation; numerically stable, matches jax.nn.sigmoid to ~1e-7.
    return 0.5 * (jnp.tanh(0.5 * z) + 1.0)


def _linear_sigmoid(x, wt, b_row):
    # x: (tb, D) f32, wt: (D, C) f32 (already transposed in the wrapper), b_row: (1, C)
    z = jnp.dot(x, wt, preferred_element_type=jnp.float32)
    return _sigmoid(z + b_row)


def _batch_tiling(batch, tile_b):
    """Balanced batch tiling: nblocks, tile rows (multiple of 8), padded batch."""
    nblocks = max(1, pl.cdiv(batch, tile_b))
    tb = -(-batch // nblocks)          # ceil(batch / nblocks): balanced, minimal padding
    tb = -(-tb // 8) * 8               # round up to sublane multiple
    return nblocks, tb, nblocks * tb


def _vmem_limit(tb, d, c):
    # Double-buffered x block + out block + small weights, with generous headroom.
    blk_bytes = tb * (d + c) * 4
    return int(min(max(6 * blk_bytes, 16 << 20), 48 << 20))


# ----------------------------- kernels -----------------------------------------

def pred_kernel(x_ref, wt_ref, b_ref, o_ref):
    o_ref[...] = _linear_sigmoid(x_ref[...], wt_ref[...], b_ref[...]).astype(o_ref.dtype)


def fused_loss_kernel(x_ref, wt_ref, b_ref, y_ref, inv_n_ref, loss_ref):
    i = pl.program_id(0)

    @pl.when(i == 0)
    def _init():
        loss_ref[0, 0] = 0.0

    probs = _linear_sigmoid(x_ref[...], wt_ref[...], b_ref[...])        # (tb, C) f32
    tb, c = probs.shape
    labels = y_ref[...]                                                 # (tb, 1) int32, -1 == pad
    valid = (labels >= 0).astype(jnp.float32)                           # (tb, 1)

    # In-kernel one-hot: lane iota vs (tb, 1) labels (padded rows -> all-zero row).
    col = lax.broadcasted_iota(jnp.int32, (tb, c), 1)
    onehot = (col == labels).astype(jnp.float32)

    # F.cross_entropy(probs, y) contribution: logsumexp(probs_i) - probs_i[y_i]
    m = jnp.max(probs, axis=-1, keepdims=True)                          # (tb, 1)
    lse = m + jnp.log(jnp.sum(jnp.exp(probs - m), axis=-1, keepdims=True))
    picked = jnp.sum(probs * onehot, axis=-1, keepdims=True)            # (tb, 1)

    loss_ref[0, 0] += jnp.sum((lse - picked) * valid)                   # masked partial sum

    @pl.when(i == pl.num_programs(0) - 1)
    def _finalize():
        loss_ref[0, 0] = loss_ref[0, 0] * inv_n_ref[0, 0]               # divide by true B


# ----------------------------- wrapper ------------------------------------------

def torch_model_forward(x, w, b, y=None, *, tile_b=8192):
    """x: (B, D) f32; w: (C, D) f32 (PyTorch layout); b: (C,) f32; y: (B,) int or None."""
    B, D = x.shape
    C = w.shape[0]
    wt = jnp.transpose(w).astype(jnp.float32)          # (D, C), one tiny XLA transpose
    b_row = b.reshape(1, C).astype(jnp.float32)

    nblocks, tb, b_pad = _batch_tiling(B, tile_b)
    x_p = jnp.pad(x, ((0, b_pad - B), (0, 0))) if b_pad > B else x
    vmem_bytes = _vmem_limit(tb, D, C)

    if y is None:
        # Inference path: tile over the batch; W^T and b are small replicated blocks.
        out = pl.pallas_call(
            pred_kernel,
            out_shape=jax.ShapeDtypeStruct((b_pad, C), jnp.float32),
            grid=(nblocks,),
            in_specs=[
                pl.BlockSpec((tb, D), lambda i: (i, 0)),     # x batch tile
                pl.BlockSpec((D, C), lambda i: (0, 0)),      # W^T (full)
                pl.BlockSpec((1, C), lambda i: (0, 0)),      # bias row (full)
            ],
            out_specs=pl.BlockSpec((tb, C), lambda i: (i, 0)),
            compiler_params=pltpu.CompilerParams(
                dimension_semantics=("parallel",),
                vmem_limit_bytes=vmem_bytes),
        )(x_p, wt, b_row)
        return out[:B]

    # Training path: batch-tiled fused kernel (linear + sigmoid + cross-entropy),
    # scalar loss accumulated in a resident (1,1) SMEM output.
    y_col = y.astype(jnp.int32).reshape(B, 1)
    y_p = (jnp.pad(y_col, ((0, b_pad - B), (0, 0)), constant_values=-1)
           if b_pad > B else y_col)
    inv_n = jnp.full((1, 1), 1.0 / B, dtype=jnp.float32)

    loss = pl.pallas_call(
        fused_loss_kernel,
        out_shape=jax.ShapeDtypeStruct((1, 1), jnp.float32),
        grid=(nblocks,),
        in_specs=[
            pl.BlockSpec((tb, D), lambda i: (i, 0)),                     # x batch tile
            pl.BlockSpec((D, C), lambda i: (0, 0)),                      # W^T (full)
            pl.BlockSpec((1, C), lambda i: (0, 0)),                      # bias row (full)
            pl.BlockSpec((tb, 1), lambda i: (i, 0)),                     # labels tile
            pl.BlockSpec(memory_space=pltpu.MemorySpace.SMEM),           # 1/B scalar
        ],
        out_specs=pl.BlockSpec(memory_space=pltpu.MemorySpace.SMEM),     # (1,1) loss
        compiler_params=pltpu.CompilerParams(
            dimension_semantics=("arbitrary",),                          # accumulator axis
            vmem_limit_bytes=vmem_bytes),
    )(x_p, wt, b_row, y_p, inv_n)
    return loss[0, 0]


# ----------------------------- reference & main ---------------------------------

def _ref_forward(x, w, b, y=None):
    probs = jax.nn.sigmoid(x @ w.T + b)
    if y is None:
        return probs
    lse = jax.nn.logsumexp(probs, axis=-1)
    picked = jnp.take_along_axis(probs, y[:, None], axis=-1)[:, 0]
    return jnp.mean(lse - picked)


if __name__ == "__main__":
    key = jax.random.PRNGKey(0)
    D, C = 32, 5   # input_size=32, nn.Linear(input_size, 5)

    for B in (8, 100):   # 100 exercises the padded / masked final-block path
        kx, kw, kb, ky = jax.random.split(jax.random.fold_in(key, B), 4)
        x = jax.random.normal(kx, (B, D), dtype=jnp.float32)
        w = jax.random.normal(kw, (C, D), dtype=jnp.float32) * 0.1
        b = jax.random.normal(kb, (C,), dtype=jnp.float32) * 0.1
        y = jax.random.randint(ky, (B,), 0, C, dtype=jnp.int32)

        # inference path (y=None): sigmoid(linear(x))
        y_pred = jax.block_until_ready(torch_model_forward(x, w, b))
        # training path (y given): cross-entropy loss on sigmoid outputs (fused kernel)
        loss = jax.block_until_ready(torch_model_forward(x, w, b, y))

        assert jnp.allclose(y_pred, _ref_forward(x, w, b), atol=1e-5), "prediction mismatch"
        assert jnp.allclose(loss, _ref_forward(x, w, b, y), atol=1e-5), "loss mismatch"

    print("KERNEL_OK")
</pallas_src>

<mosaic_0001>
module attributes {stable_mosaic.version = 11 : i64} {
  func.func @pred_kernel(%arg0: i32, %arg1: memref<8x32xf32, #tpu.memory_space<vmem>>, %arg2: memref<32x5xf32, #tpu.memory_space<vmem>>, %arg3: memref<1x5xf32, #tpu.memory_space<vmem>>, %arg4: memref<8x5xf32, #tpu.memory_space<vmem>>) attributes {dimension_semantics = [#tpu.dimension_semantics<parallel>], iteration_bounds = array<i64: 1>, scalar_prefetch = 0 : i64, scratch_operands = 0 : i64, tpu.core_type = #tpu.core_type<tc>, window_params = [{transform_indices = @transform_0, window_bounds = array<i64: 8, 32>}, {pipeline_mode = #tpu.pipeline_mode<synchronous>, transform_indices = @transform_1, window_bounds = array<i64: 32, 5>}, {pipeline_mode = #tpu.pipeline_mode<synchronous>, transform_indices = @transform_2, window_bounds = array<i64: 1, 5>}, {transform_indices = @transform_3, window_bounds = array<i64: 8, 5>}]} {
    %c0 = arith.constant 0 : index
    %c0_0 = arith.constant 0 : index
    %0 = vector.load %arg1[%c0, %c0_0] : memref<8x32xf32, #tpu.memory_space<vmem>>, vector<8x32xf32>
    %c0_1 = arith.constant 0 : index
    %c0_2 = arith.constant 0 : index
    %1 = vector.load %arg2[%c0_1, %c0_2] : memref<32x5xf32, #tpu.memory_space<vmem>>, vector<32x5xf32>
    %c0_3 = arith.constant 0 : index
    %c0_4 = arith.constant 0 : index
    %2 = vector.load %arg3[%c0_3, %c0_4] : memref<1x5xf32, #tpu.memory_space<vmem>>, vector<1x5xf32>
    %cst = arith.constant dense<0.000000e+00> : vector<8x5xf32>
    %3 = tpu.matmul %0, %1, %cst {dimension_numbers = #tpu.dot_dimension_numbers<[1], [0], [0], [1], [0, 0, 1, 1], [], []>} : vector<8x32xf32>, vector<32x5xf32>, vector<8x5xf32> -> vector<8x5xf32>
    %4 = vector.broadcast %2 : vector<1x5xf32> to vector<8x5xf32>
    %5 = arith.addf %3, %4 : vector<8x5xf32>
    %cst_5 = arith.constant 5.000000e-01 : f32
    %6 = vector.broadcast %cst_5 : f32 to vector<8x5xf32>
    %7 = arith.mulf %6, %5 : vector<8x5xf32>
    %8 = math.tanh %7 : vector<8x5xf32>
    %cst_6 = arith.constant 1.000000e+00 : f32
    %9 = vector.broadcast %cst_6 : f32 to vector<8x5xf32>
    %10 = arith.addf %8, %9 : vector<8x5xf32>
    %cst_7 = arith.constant 5.000000e-01 : f32
    %11 = vector.broadcast %cst_7 : f32 to vector<8x5xf32>
    %12 = arith.mulf %11, %10 : vector<8x5xf32>
    %c0_8 = arith.constant 0 : index
    %c0_9 = arith.constant 0 : index
    %13 = vector.load %arg4[%c0_8, %c0_9] : memref<8x5xf32, #tpu.memory_space<vmem>>, vector<8x5xf32>
    tpu.vector_store %arg4[%c0_8, %c0_9], %12 {strides = array<i32>} : memref<8x5xf32, #tpu.memory_space<vmem>>, vector<8x5xf32>,
    return
  }
  func.func @transform_0(%arg0: i32) -> (i32, i32) {
    %c0_i32 = arith.constant 0 : i32
    %c0_i32_0 = arith.constant 0 : i32
    return %arg0, %c0_i32 : i32, i32
  }
  func.func @transform_1(%arg0: i32) -> (i32, i32) {
    %c0_i32 = arith.constant 0 : i32
    %c0_i32_0 = arith.constant 0 : i32
    %c0_i32_1 = arith.constant 0 : i32
    return %c0_i32, %c0_i32_0 : i32, i32
  }
  func.func @transform_2(%arg0: i32) -> (i32, i32) {
    %c0_i32 = arith.constant 0 : i32
    %c0_i32_0 = arith.constant 0 : i32
    %c0_i32_1 = arith.constant 0 : i32
    return %c0_i32, %c0_i32_0 : i32, i32
  }
  func.func @transform_3(%arg0: i32) -> (i32, i32) {
    %c0_i32 = arith.constant 0 : i32
    %c0_i32_0 = arith.constant 0 : i32
    return %arg0, %c0_i32 : i32, i32
  }
}

</mosaic_0001>

<llo_original>
// kernel: tpu_custom_call.1
$region0: #{tpu_custom_call.1}
  #allocation0 [shape = 'u32[]', space=smem, size = 0x4, offset = 0x4, fixed_abs, tag = 'smem constant byte address 0x4 - core index']
  #allocation1 [shape = 'u32[144,128]{1,0:T(1,128)}', space=vmem, size = 0x12000, scoped, tag = 'internal scratch']
  %s0 = inlined_call_operand.vmem [shape: f32[8,32], index: 0, kind: input, shape index: {}]
  %s1 = inlined_call_operand.vmem [shape: f32[32,5], index: 1, kind: input, shape index: {}]
  %s2 = inlined_call_operand.vmem [shape: f32[1,5], index: 2, kind: input, shape index: {}]
  %s3 = inlined_call_operand.hbm [shape: f32[8,5], index: 3, kind: output, shape index: {}]
  %s4 = sld [smem:[#allocation0]]
  $region22: #{tpu_custom_call.1} parent=0
    _
  %s6 = ssub.s32 1, %s4
  %s7 = scalar_select 0, %s6, %s4
  $region1: #{tpu_custom_call.1} parent=0
    #allocation2 [shape = 'u8[4096]{0}', space=vmem, size = 0x1000, scoped, tag = 'output window, operand 0, single buffered']
    #allocation3 [shape = 's32[1]{0}', space=sflag, size = 0x4, scoped, tag = 'scoped memory for tpu_custom_call.1']
    %8 = vsyncpa [#allocation3], 0
    // Predicated region
    $region2: #{tpu_custom_call.1} parent=1 // pred_check
      _
    $region3: #{tpu_custom_call.1} parent=1 // pred_check_branch
      %10 = sbr.rel (0) target = $region5
    $region4: #{tpu_custom_call.1} parent=1 // pred_region
      _
    $region5: #{tpu_custom_call.1} parent=1 // pred_fallthru
      _
    // Predicated region
    $region6: #{tpu_custom_call.1} parent=1 // pred_check
      _
    $region7: #{tpu_custom_call.1} parent=1 // pred_check_branch
      %12 = sbr.rel (0) target = $region9
    $region8: #{tpu_custom_call.1} parent=1 // pred_region
      _
    $region9: #{tpu_custom_call.1} parent=1 // pred_fallthru
      _
    // Predicated region
    $region10: #{tpu_custom_call.1} parent=1 // pred_check
      _
    $region11: #{tpu_custom_call.1} parent=1 // pred_check_branch
      %14 = sbr.rel (0) target = $region13
    $region12: #{tpu_custom_call.1} parent=1 // pred_region
      _
    $region13: #{tpu_custom_call.1} parent=1 // pred_fallthru
      _
    %v15 = vld [vmem:[%s0] sm:$0xff]
    %v16 = vld [vmem:[%s1] sm:$0xff]
    %v17 = vld [vmem:[%s1 + $0x8] sm:$0xff]
    %v18 = vld [vmem:[%s1 + $0x10] sm:$0xff]
    %v19 = vld [vmem:[%s1 + $0x18] sm:$0xff]
    %v20 = vld [vmem:[%s2] sm:$0x1]
    %v22 = vlaneseq
    %v23 = vshrl.u32 %v22, 7
    %v24 = vsub.s32 0, %v23
    %v25 = vrot.slane %v20, %v24
    %vm27 = vcmask 261120
    %v29 = vsel %vm27, %v15, 0
    %31 = vmatprep.subr.mxu0 0.0
    %32 = vmatpush1.msra.mxu0 %v16
    %33 = vmatprep.subr.mxu0 0.0
    %34 = vmatpush1.msra.mxu0 %v17
    %35 = vmatprep.subr.mxu0 0.0
    %36 = vmatpush1.msra.mxu0 %v18
    %37 = vmatprep.subr.mxu0 0.0
    %38 = vmatpush1.msra.mxu0 %v19
    %39 = vmatprep.subr.mxu0 0.0
    %40 = vmatpush1.msra.mxu0 0.0
    %41 = vmatprep.subr.mxu0 0.0
    %42 = vmatpush1.msra.mxu0 0.0
    %43 = vmatprep.subr.mxu0 0.0
    %44 = vmatpush1.msra.mxu0 0.0
    %45 = vmatprep.subr.mxu0 0.0
    %46 = vmatpush1.msra.mxu0 0.0
    %47 = vmatprep.subr.mxu0 0.0
    %48 = vmatpush1.msra.mxu0 0.0
    %49 = vmatprep.subr.mxu0 0.0
    %50 = vmatpush1.msra.mxu0 0.0
    %51 = vmatprep.subr.mxu0 0.0
    %52 = vmatpush1.msra.mxu0 0.0
    %53 = vmatprep.subr.mxu0 0.0
    %54 = vmatpush1.msra.mxu0 0.0
    %55 = vmatprep.subr.mxu0 0.0
    %56 = vmatpush1.msra.mxu0 0.0
    %57 = vmatprep.subr.mxu0 0.0
    %58 = vmatpush1.msra.mxu0 0.0
    %59 = vmatprep.subr.mxu0 0.0
    %60 = vmatpush1.msra.mxu0 0.0
    %61 = vmatprep.subr.mxu0 0.0
    %62 = vmatpush1.msra.mxu0 0.0
    %63 = vmatprep.subr.mxu0 0.0
    %64 = vmatpush1.msra.mxu0 0.0
    %65 = vmatprep.subr.mxu0 0.0
    %66 = vmatpush1.msra.mxu0 0.0
    %67 = vmatprep.subr.mxu0 0.0
    %68 = vmatpush1.msra.mxu0 0.0
    %69 = vmatprep.subr.mxu0 0.0
    %70 = vmatpush1.msra.mxu0 0.0
    %71 = vmatprep.subr.mxu0 0.0
    %72 = vmatpush1.msra.mxu0 0.0
    %73 = vmatprep.subr.mxu0 0.0
    %74 = vmatpush1.msra.mxu0 0.0
    %75 = vmatprep.subr.mxu0 0.0
    %76 = vmatpush1.msra.mxu0 0.0
    %77 = vmatprep.subr.mxu0 0.0
    %78 = vmatpush1.msra.mxu0 0.0
    %79 = vmatprep.subr.mxu0 0.0
    %80 = vmatpush1.msra.mxu0 0.0
    %81 = vmatprep.subr.mxu0 0.0
    %82 = vmatpush1.msra.mxu0 0.0
    %83 = vmatprep.subr.mxu0 0.0
    %84 = vmatpush1.msra.mxu0 0.0
    %85 = vmatprep.subr.mxu0 0.0
    %86 = vmatpush1.msra.mxu0 0.0
    %87 = vmatprep.subr.mxu0 0.0
    %88 = vmatpush1.msra.mxu0 0.0
    %89 = vmatprep.subr.mxu0 0.0
    %90 = vmatpush1.msra.mxu0 0.0
    %91 = vmatprep.subr.mxu0 0.0
    %92 = vmatpush1.msra.mxu0 0.0
    %93 = vmatprep.subr.mxu0 0.0
    %94 = vmatpush1.msra.mxu0 0.0
    %95 = vmatprep.mubr.f32.mxu0 0.0
    %96 = vmatmul.mubr.f32.gmra.mrb[0].mxu0 %v29
    %v97 = vpop.f32.mrb[0].mxu0
    %v98 = vadd.f32 %v25, %v97
    %v99 = vpop.f32.mrb[0].mxu0
    %100 = vdwg.mxu0
    %v101 = vmul.f32 %v98, 0.5
    %v102 = vtanh.pop %v101
    %v103 = vadd.f32 %v102, 1.0
    %v104 = vmul.f32 %v103, 0.5
    %vm105 = vcmask 39936
    %106 = vst.msk [vmem:[#allocation2] sm:$0xff] %vm105, %v104
    // Predicated region
    $region14: #{tpu_custom_call.1} parent=1 // pred_check
      _
    $region15: #{tpu_custom_call.1} parent=1 // pred_check_branch
      %108 = sbr.rel (0) target = $region17
    $region16: #{tpu_custom_call.1} parent=1 // pred_region
      %s110 = ssub.s32 128, 128
      %111 = vsyncadd [#allocation3], %s110
      %s113 = sshll.u32 [#allocation2], 4
      %s114 = int_to_ptr.vmem [resolvable:$true] %s113
      %116 = dma.vmem_to_hbm [thread:$0]  %s114, 128, %s3, [#allocation3]
    $region17: #{tpu_custom_call.1} parent=1 // pred_fallthru
      _
    // Predicated region
    $region18: #{tpu_custom_call.1} parent=1 // pred_check
      _
    $region19: #{tpu_custom_call.1} parent=1 // pred_check_branch
      %118 = sbr.rel (0) target = $region21
    $region20: #{tpu_custom_call.1} parent=1 // pred_region
      %119 = dma.done [#allocation3], 128
    $region21: #{tpu_custom_call.1} parent=1 // pred_fallthru
      _
    %120 = vsyncpa [#allocation3], 1

</llo_original>
